<compile_context>
chip_gen: v6e
topology: v6e:2x2x1
jax: 0.10.0
libtpu: 0.0.40
codegen_flags: <defaults>
</compile_context>

<pallas_src>
import functools

import jax
import jax.numpy as jnp
from jax.experimental import pallas as pl
from jax.experimental.pallas import tpu as pltpu

_VMEM_LIMIT = 32 * 1024 * 1024  # explicit scoped-VMEM budget (fits v5e/v6e/v7x)


def _round_up(x, m):
    return ((x + m - 1) // m) * m


def _tile(dim, pref):
    """Largest power-of-two-ish tile <= pref that divides dim (else full dim)."""
    t = min(pref, dim)
    while t > 8 and dim % t:
        t //= 2
    return t if dim % t == 0 else dim


def _pad2(a, shape):
    """Zero-pad a 2-D array up to `shape` (exact: zeros contribute nothing)."""
    return jnp.pad(a, ((0, shape[0] - a.shape[0]), (0, shape[1] - a.shape[1])))


# ----------------------------------------------------------------------------
# Generic tiled matmul: C = [relu](A @ B), bf16 MXU operands, f32 accumulation.
# ----------------------------------------------------------------------------
def _matmul_kernel(a_ref, b_ref, o_ref, acc_ref, *, relu):
    @pl.when(pl.program_id(2) == 0)
    def _():
        acc_ref[...] = jnp.zeros_like(acc_ref)

    acc_ref[...] += jnp.dot(
        a_ref[...].astype(jnp.bfloat16),
        b_ref[...].astype(jnp.bfloat16),
        preferred_element_type=jnp.float32,
    )

    @pl.when(pl.program_id(2) == pl.num_programs(2) - 1)
    def _():
        r = acc_ref[...]
        if relu:
            r = jnp.maximum(r, 0.0)
        o_ref[...] = r.astype(o_ref.dtype)


def pallas_matmul(a, b, *, relu=False, out_dtype=jnp.float32,
                  tm=512, tn=256, tk=512):
    M, K = a.shape
    K2, N = b.shape
    assert K == K2
    tm, tn, tk = _tile(M, tm), _tile(N, tn), _tile(K, tk)
    return pl.pallas_call(
        functools.partial(_matmul_kernel, relu=relu),
        out_shape=jax.ShapeDtypeStruct((M, N), out_dtype),
        grid_spec=pltpu.PrefetchScalarGridSpec(
            num_scalar_prefetch=0,
            grid=(M // tm, N // tn, K // tk),
            in_specs=[
                pl.BlockSpec((tm, tk), lambda i, j, k: (i, k)),
                pl.BlockSpec((tk, tn), lambda i, j, k: (k, j)),
            ],
            out_specs=pl.BlockSpec((tm, tn), lambda i, j, k: (i, j)),
            scratch_shapes=[pltpu.VMEM((tm, tn), jnp.float32)],
        ),
        compiler_params=pltpu.CompilerParams(
            dimension_semantics=("parallel", "parallel", "arbitrary"),
            vmem_limit_bytes=_VMEM_LIMIT,
        ),
    )(a, b)


# ----------------------------------------------------------------------------
# Fused final stage:
#   emb = adj @ hw   (accumulated over the N reduction axis in VMEM)
# and, on the last reduction step, from the resident accumulator tile:
#   emb_bf16 copy (feeds the gram stage at half the HBM traffic)
#   x_d = ReLU(emb @ W3) @ W4
#   q   = Student-t soft assignment vs. cluster centers
# ----------------------------------------------------------------------------
def _emb_q_xd_kernel(adj_ref, hw_ref, clu_t_ref, w3_ref, w4_ref,
                     emb_ref, emb_bf_ref, q_ref, xd_ref, acc_ref,
                     *, n_clusters, v):
    k = pl.program_id(1)

    @pl.when(k == 0)
    def _():
        acc_ref[...] = jnp.zeros_like(acc_ref)

    acc_ref[...] += jnp.dot(adj_ref[...], hw_ref[...],
                            preferred_element_type=jnp.float32)

    @pl.when(k == pl.num_programs(1) - 1)
    def _():
        emb = acc_ref[...]                                   # [tm, Ep] f32
        emb_ref[...] = emb
        emb_bf = emb.astype(jnp.bfloat16)
        emb_bf_ref[...] = emb_bf

        # ---- decoder: x_d = ReLU(emb @ W3) @ W4 (weights resident in VMEM) ----
        d = jnp.maximum(
            jnp.dot(emb_bf, w3_ref[...], preferred_element_type=jnp.float32),
            0.0)
        xd_ref[...] = jnp.dot(d.astype(jnp.bfloat16), w4_ref[...],
                              preferred_element_type=jnp.float32)

        # ---- Student-t soft assignment (f32 for distance fidelity) ----
        ct = clu_t_ref[...]                                  # [Ep, Kp] f32
        e2 = jnp.sum(emb * emb, axis=1, keepdims=True)       # [tm, 1]
        c2 = jnp.sum(ct * ct, axis=0, keepdims=True)         # [1, Kp]
        cross = jnp.dot(emb, ct, preferred_element_type=jnp.float32)
        dist2 = jnp.maximum(e2 + c2 - 2.0 * cross, 0.0)
        qv = pl.reciprocal(1.0 + dist2 * (1.0 / v), approx=True)
        exponent = (v + 1.0) / 2.0
        if exponent != 1.0:        # v == 1 (module default): pow is a no-op
            qv = qv ** exponent
        # Mask lane-padding cluster columns before row-normalizing.
        col = jax.lax.broadcasted_iota(jnp.int32, qv.shape, dimension=1)
        qv = jnp.where(col < n_clusters, qv, 0.0)
        denom = jnp.sum(qv, axis=1, keepdims=True)
        q_ref[...] = qv * pl.reciprocal(denom, approx=True)


def fused_emb_q_xd(adj, hw, clu_t, w3, w4, n_clusters, v, *, tm=512, tk=512):
    N = adj.shape[0]
    Ep = hw.shape[1]
    Kp = clu_t.shape[1]
    Lp = w3.shape[1]
    Fp = w4.shape[1]
    tm, tk = _tile(N, tm), _tile(N, tk)
    return pl.pallas_call(
        functools.partial(_emb_q_xd_kernel, n_clusters=n_clusters, v=v),
        out_shape=(
            jax.ShapeDtypeStruct((N, Ep), jnp.float32),    # embedding (f32)
            jax.ShapeDtypeStruct((N, Ep), jnp.bfloat16),   # embedding (bf16 copy)
            jax.ShapeDtypeStruct((N, Kp), jnp.float32),    # q
            jax.ShapeDtypeStruct((N, Fp), jnp.float32),    # x_d (lane-padded)
        ),
        grid_spec=pltpu.PrefetchScalarGridSpec(
            num_scalar_prefetch=0,
            grid=(N // tm, N // tk),
            in_specs=[
                pl.BlockSpec((tm, tk), lambda i, k: (i, k)),   # adj
                pl.BlockSpec((tk, Ep), lambda i, k: (k, 0)),   # hw
                pl.BlockSpec((Ep, Kp), lambda i, k: (0, 0)),   # clusters^T
                pl.BlockSpec((Ep, Lp), lambda i, k: (0, 0)),   # W3
                pl.BlockSpec((Lp, Fp), lambda i, k: (0, 0)),   # W4
            ],
            out_specs=[
                pl.BlockSpec((tm, Ep), lambda i, k: (i, 0)),
                pl.BlockSpec((tm, Ep), lambda i, k: (i, 0)),
                pl.BlockSpec((tm, Kp), lambda i, k: (i, 0)),
                pl.BlockSpec((tm, Fp), lambda i, k: (i, 0)),
            ],
            scratch_shapes=[pltpu.VMEM((tm, Ep), jnp.float32)],
        ),
        compiler_params=pltpu.CompilerParams(
            dimension_semantics=("parallel", "arbitrary"),
            vmem_limit_bytes=_VMEM_LIMIT,
        ),
    )(adj, hw, clu_t, w3, w4)


# ----------------------------------------------------------------------------
# A_pred = sigmoid(E @ E^T), tiled over (row-tile i, row-tile j); bf16 input.
# ----------------------------------------------------------------------------
def _gram_sigmoid_kernel(ei_ref, ej_ref, o_ref):
    # Contract the shared feature dim directly -> no materialized transpose.
    logits = jax.lax.dot_general(
        ei_ref[...], ej_ref[...],
        dimension_numbers=(((1,), (1,)), ((), ())),
        preferred_element_type=jnp.float32,
    )
    # NOTE: kept f32 for module-semantics fidelity; write bf16 (or fuse the
    # reconstruction loss) if A_pred only feeds a loss.
    o_ref[...] = jax.nn.sigmoid(logits)


def gram_sigmoid(emb_bf16, *, tm=512, tn=512):
    N, Ep = emb_bf16.shape
    tm, tn = _tile(N, tm), _tile(N, tn)
    return pl.pallas_call(
        _gram_sigmoid_kernel,
        out_shape=jax.ShapeDtypeStruct((N, N), jnp.float32),
        grid_spec=pltpu.PrefetchScalarGridSpec(
            num_scalar_prefetch=0,
            grid=(N // tm, N // tn),
            in_specs=[
                pl.BlockSpec((tm, Ep), lambda i, j: (i, 0)),
                pl.BlockSpec((tn, Ep), lambda i, j: (j, 0)),
            ],
            out_specs=pl.BlockSpec((tm, tn), lambda i, j: (i, j)),
        ),
        compiler_params=pltpu.CompilerParams(
            dimension_semantics=("parallel", "parallel"),
            vmem_limit_bytes=_VMEM_LIMIT,
        ),
    )(emb_bf16, emb_bf16)


# ----------------------------------------------------------------------------
# SYNC forward
# ----------------------------------------------------------------------------
def sync_forward(x, adj, w1, w2, w3, w4, cluster_layer, v=1.0):
    """Returns (A_pred, embedding, x_d, q) — same semantics as SYNC.forward."""
    N, F = x.shape
    H, E, L = w1.shape[1], w2.shape[1], w3.shape[1]
    K = cluster_layer.shape[0]
    Hp, Ep, Lp, Kp, Fp = (_round_up(d, 128) for d in (H, E, L, K, F))
    bf16, f32 = jnp.bfloat16, jnp.float32

    # Zero-pad the small feature dims so every matmul output / q / x_d store
    # is lane-dense.  Exact: zero rows/cols contribute 0 through matmul, ReLU
    # and squared distances.  Weights stream as bf16 MXU operands.
    w1p = _pad2(w1, (F, Hp)).astype(bf16)
    w2p = _pad2(w2, (Hp, Ep)).astype(bf16)
    w3p = _pad2(w3, (Ep, Lp)).astype(bf16)
    w4p = _pad2(w4, (Lp, Fp)).astype(bf16)
    clu_t = jnp.transpose(_pad2(cluster_layer, (Kp, Ep))).astype(f32)  # [Ep, Kp]

    xb, adjb = x.astype(bf16), adj.astype(bf16)

    # --- TIGAE encoder: two GCN layers ---
    xw = pallas_matmul(xb, w1p, out_dtype=bf16)                # [N, Hp]
    h = pallas_matmul(adjb, xw, relu=True, out_dtype=bf16)     # [N, Hp]
    hw = pallas_matmul(h, w2p, out_dtype=bf16)                 # [N, Ep]

    # --- fused: embedding + Student-t q + linear decoder (single pass) ---
    emb_f32, emb_bf16, q, x_d = fused_emb_q_xd(
        adjb, hw, clu_t, w3p, w4p, K, float(v))

    # --- inner-product decoder on the bf16 embedding copy ---
    a_pred = gram_sigmoid(emb_bf16)                            # [N, N]

    return a_pred, emb_f32[:, :E], x_d[:, :F], q[:, :K]


# ----------------------------------------------------------------------------
# References + demo
# ----------------------------------------------------------------------------
def _xavier_normal(key, shape):
    fan_in, fan_out = shape[-2], shape[-1]
    std = (2.0 / (fan_in + fan_out)) ** 0.5
    return std * jax.random.normal(key, shape, dtype=jnp.float32)


def _reference_f32(x, adj, w1, w2, w3, w4, clu, v):
    h = jnp.maximum(adj @ (x @ w1), 0.0)
    emb = adj @ (h @ w2)
    a_pred = jax.nn.sigmoid(emb @ emb.T)
    x_d = jnp.maximum(emb @ w3, 0.0) @ w4
    diff = emb[:, None, :] - clu[None, :, :]
    q = 1.0 / (1.0 + jnp.sum(diff * diff, axis=2) / v)
    q = q ** ((v + 1.0) / 2.0)
    q = q / jnp.sum(q, axis=1, keepdims=True)
    return a_pred, emb, x_d, q


def _reference_matched(x, adj, w1, w2, w3, w4, clu, v):
    """Mirrors the kernel numerics (bf16 MXU operands, f32 accumulation)."""
    bf16, f32 = jnp.bfloat16, jnp.float32
    mm = lambda a, b: jnp.dot(a.astype(bf16), b.astype(bf16),
                              preferred_element_type=f32)
    xw = mm(x, w1).astype(bf16)
    h = jnp.maximum(mm(adj, xw), 0.0).astype(bf16)
    hw = mm(h, w2).astype(bf16)
    emb = mm(adj, hw)
    a_pred = jax.nn.sigmoid(mm(emb, emb.T))
    d = jnp.maximum(mm(emb, w3), 0.0).astype(bf16)
    x_d = mm(d, w4)
    e2 = jnp.sum(emb * emb, axis=1, keepdims=True)
    c2 = jnp.sum(clu * clu, axis=1, keepdims=True).T
    dist2 = jnp.maximum(e2 + c2 - 2.0 * (emb @ clu.T), 0.0)
    q = 1.0 / (1.0 + dist2 / v)
    q = q ** ((v + 1.0) / 2.0)
    q = q / jnp.sum(q, axis=1, keepdims=True)
    return a_pred, emb, x_d, q


if __name__ == "__main__":
    # Small deterministic problem: N=8 nodes, input_dim=16, hidden=32,
    # embedding=8, linear_dim=16, clusters=4; v=1 (module default).
    N, input_dim, hidden_dim, embedding_dim, linear_dim, clusters = 8, 16, 32, 8, 16, 4
    v = 1.0

    key = jax.random.PRNGKey(0)
    k_x, k_a, k1, k2, k3, k4, kc = jax.random.split(key, 7)

    x = jax.random.normal(k_x, (N, input_dim), dtype=jnp.float32)
    adj_raw = jax.random.uniform(k_a, (N, N), dtype=jnp.float32)
    adj = 0.5 * (adj_raw + adj_raw.T) + jnp.eye(N, dtype=jnp.float32)

    w1 = _xavier_normal(k1, (input_dim, hidden_dim))
    w2 = _xavier_normal(k2, (hidden_dim, embedding_dim))
    w3 = _xavier_normal(k3, (embedding_dim, linear_dim))
    w4 = _xavier_normal(k4, (linear_dim, input_dim))
    cluster_layer = _xavier_normal(kc, (clusters, embedding_dim))

    outs = jax.block_until_ready(
        sync_forward(x, adj, w1, w2, w3, w4, cluster_layer, v=v))

    # Tight check against a reference with the same numerics (verifies kernels).
    matched = _reference_matched(x, adj, w1, w2, w3, w4, cluster_layer, v)
    for o, r in zip(outs, matched):
        assert o.shape == r.shape, (o.shape, r.shape)
        assert jnp.allclose(o, r.astype(o.dtype), atol=1e-2, rtol=1e-2)

    # Loose sanity check against the pure-f32 module semantics (bf16 MXU
    # operands trade a little precision for 2x MXU throughput and half the
    # adj HBM traffic; this guards against structural errors only).
    f32_ref = _reference_f32(x, adj, w1, w2, w3, w4, cluster_layer, v)
    for o, r in zip(outs, f32_ref):
        assert o.shape == r.shape and o.dtype == r.dtype
        assert jnp.allclose(o, r, atol=2e-1, rtol=2e-1)

    print("KERNEL_OK")
</pallas_src>

<mosaic_0001>
module attributes {stable_mosaic.version = 11 : i64} {
  func.func @_matmul_kernel(%arg0: i32, %arg1: i32, %arg2: i32, %arg3: memref<8x16xbf16, #tpu.memory_space<vmem>>, %arg4: memref<16x128xbf16, #tpu.memory_space<vmem>>, %arg5: memref<8x128xbf16, #tpu.memory_space<vmem>>, %arg6: memref<8x128xf32, #tpu.memory_space<vmem>>) attributes {dimension_semantics = [#tpu.dimension_semantics<parallel>, #tpu.dimension_semantics<parallel>, #tpu.dimension_semantics<arbitrary>], iteration_bounds = array<i64: 1, 1, 1>, scalar_prefetch = 0 : i64, scratch_operands = 1 : i64, tpu.core_type = #tpu.core_type<tc>, window_params = [{transform_indices = @transform_0, window_bounds = array<i64: 8, 16>}, {transform_indices = @transform_1, window_bounds = array<i64: 16, 128>}, {transform_indices = @transform_2, window_bounds = array<i64: 8, 128>}]} {
    %c0_i32 = arith.constant 0 : i32
    %0 = arith.cmpi eq, %arg2, %c0_i32 : i32
    %1 = arith.extui %0 : i1 to i32
    %c0_i32_0 = arith.constant 0 : i32
    %2 = arith.cmpi ne, %1, %c0_i32_0 : i32
    scf.if %2 {
      %cst_10 = arith.constant 0.000000e+00 : f32
      %12 = vector.broadcast %cst_10 : f32 to vector<8x128xf32>
      %c0_11 = arith.constant 0 : index
      %c0_12 = arith.constant 0 : index
      %13 = vector.load %arg6[%c0_11, %c0_12] : memref<8x128xf32, #tpu.memory_space<vmem>>, vector<8x128xf32>
      tpu.vector_store %arg6[%c0_11, %c0_12], %12 {strides = array<i32>} : memref<8x128xf32, #tpu.memory_space<vmem>>, vector<8x128xf32>,
    } else {
    }
    %c0 = arith.constant 0 : index
    %c0_1 = arith.constant 0 : index
    %3 = vector.load %arg6[%c0, %c0_1] : memref<8x128xf32, #tpu.memory_space<vmem>>, vector<8x128xf32>
    %c0_2 = arith.constant 0 : index
    %c0_3 = arith.constant 0 : index
    %4 = vector.load %arg3[%c0_2, %c0_3] : memref<8x16xbf16, #tpu.memory_space<vmem>>, vector<8x16xbf16>
    %c0_4 = arith.constant 0 : index
    %c0_5 = arith.constant 0 : index
    %5 = vector.load %arg4[%c0_4, %c0_5] : memref<16x128xbf16, #tpu.memory_space<vmem>>, vector<16x128xbf16>
    %cst = arith.constant dense<0.000000e+00> : vector<8x128xf32>
    %6 = tpu.matmul %4, %5, %cst {dimension_numbers = #tpu.dot_dimension_numbers<[1], [0], [0], [1], [0, 0, 1, 1], [], []>} : vector<8x16xbf16>, vector<16x128xbf16>, vector<8x128xf32> -> vector<8x128xf32>
    %7 = arith.addf %3, %6 : vector<8x128xf32>
    %c0_6 = arith.constant 0 : index
    %c0_7 = arith.constant 0 : index
    %8 = vector.load %arg6[%c0_6, %c0_7] : memref<8x128xf32, #tpu.memory_space<vmem>>, vector<8x128xf32>
    tpu.vector_store %arg6[%c0_6, %c0_7], %7 {strides = array<i32>} : memref<8x128xf32, #tpu.memory_space<vmem>>, vector<8x128xf32>,
    %c0_i32_8 = arith.constant 0 : i32
    %9 = arith.cmpi eq, %arg2, %c0_i32_8 : i32
    %10 = arith.extui %9 : i1 to i32
    %c0_i32_9 = arith.constant 0 : i32
    %11 = arith.cmpi ne, %10, %c0_i32_9 : i32
    scf.if %11 {
      %c0_10 = arith.constant 0 : index
      %c0_11 = arith.constant 0 : index
      %12 = vector.load %arg6[%c0_10, %c0_11] : memref<8x128xf32, #tpu.memory_space<vmem>>, vector<8x128xf32>
      %13 = arith.truncf %12 : vector<8x128xf32> to vector<8x128xbf16>
      %c0_12 = arith.constant 0 : index
      %c0_13 = arith.constant 0 : index
      %14 = vector.load %arg5[%c0_12, %c0_13] : memref<8x128xbf16, #tpu.memory_space<vmem>>, vector<8x128xbf16>
      tpu.vector_store %arg5[%c0_12, %c0_13], %13 {strides = array<i32>} : memref<8x128xbf16, #tpu.memory_space<vmem>>, vector<8x128xbf16>,
    } else {
    }
    return
  }
  func.func @transform_0(%arg0: i32, %arg1: i32, %arg2: i32) -> (i32, i32) {
    %c0_i32 = arith.constant 0 : i32
    return %arg0, %arg2 : i32, i32
  }
  func.func @transform_1(%arg0: i32, %arg1: i32, %arg2: i32) -> (i32, i32) {
    %c0_i32 = arith.constant 0 : i32
    return %arg2, %arg1 : i32, i32
  }
  func.func @transform_2(%arg0: i32, %arg1: i32, %arg2: i32) -> (i32, i32) {
    %c0_i32 = arith.constant 0 : i32
    return %arg0, %arg1 : i32, i32
  }
}

</mosaic_0001>

<llo_original>
// kernel: tpu_custom_call.1
$region0: #{tpu_custom_call.1}
  #allocation0 [shape = 'u32[]', space=smem, size = 0x4, offset = 0x4, fixed_abs, tag = 'smem constant byte address 0x4 - core index']
  #allocation1 [shape = 'u32[144,128]{1,0:T(1,128)}', space=vmem, size = 0x12000, scoped, tag = 'internal scratch']
  #allocation2 [shape = 'f32[8,128]{1,0:T(8,128)}', space=vmem, size = 0x1000, scoped, tag = 'scratch operand']
  %s0 = inlined_call_operand.hbm [shape: bf16[8,16], index: 0, kind: input, shape index: {}]
  %s1 = inlined_call_operand.hbm [shape: bf16[16,128], index: 1, kind: input, shape index: {}]
  %s2 = inlined_call_operand.hbm [shape: bf16[8,128], index: 2, kind: output, shape index: {}]
  %s3 = sld [smem:[#allocation0]]
  $region34: #{tpu_custom_call.1} parent=0
    _
  %s5 = ssub.s32 1, %s3
  %s6 = scalar_select 0, %s5, %s3
  $region1: #{tpu_custom_call.1} parent=0
    #allocation3 [shape = 'u8[2048]{0}', space=vmem, size = 0x800, scoped, tag = 'input window, operand 0, single buffered']
    #allocation4 [shape = 's32[1]{0}', space=sflag, size = 0x4, scoped, tag = 'scoped memory for tpu_custom_call.1']
    #allocation5 [shape = 's32[1]{0}', space=sflag, size = 0x4, scoped, tag = 'scoped memory for tpu_custom_call.1']
    #allocation6 [shape = 'u8[4096]{0}', space=vmem, size = 0x1000, scoped, tag = 'input window, operand 1, single buffered']
    #allocation7 [shape = 's32[1]{0}', space=sflag, size = 0x4, scoped, tag = 'scoped memory for tpu_custom_call.1']
    #allocation8 [shape = 'u8[2048]{0}', space=vmem, size = 0x800, scoped, tag = 'output window, operand 0, single buffered']
    %7 = vsyncpa [#allocation4], 0
    %8 = vsyncpa [#allocation7], 0
    %9 = vsyncpa [#allocation5], 0
    // Predicated region
    $region2: #{tpu_custom_call.1} parent=1 // pred_check
      _
    $region3: #{tpu_custom_call.1} parent=1 // pred_check_branch
      %11 = sbr.rel (0) target = $region5
    $region4: #{tpu_custom_call.1} parent=1 // pred_region
      %s13 = ssub.s32 64, 64
      %14 = vsyncadd [#allocation4], %s13
      %s16 = sshll.u32 [#allocation3], 4
      %s17 = int_to_ptr.vmem [resolvable:$true] %s16
      %19 = dma.hbm_to_vmem [thread:$0]  %s0, 64, %s17, [#allocation4]
    $region5: #{tpu_custom_call.1} parent=1 // pred_fallthru
      _
    // Predicated region
    $region6: #{tpu_custom_call.1} parent=1 // pred_check
      _
    $region7: #{tpu_custom_call.1} parent=1 // pred_check_branch
      %21 = sbr.rel (0) target = $region9
    $region8: #{tpu_custom_call.1} parent=1 // pred_region
      %s23 = ssub.s32 128, 128
      %24 = vsyncadd [#allocation7], %s23
      %s25 = sshll.u32 [#allocation6], 4
      %s26 = int_to_ptr.vmem [resolvable:$true] %s25
      %31 = dma.hbm_to_vmem [thread:$0]  %s1, 128, %s26, [#allocation7], 64, 64, 4
    $region9: #{tpu_custom_call.1} parent=1 // pred_fallthru
      _
    // Predicated region
    $region10: #{tpu_custom_call.1} parent=1 // pred_check
      _
    $region11: #{tpu_custom_call.1} parent=1 // pred_check_branch
      %33 = sbr.rel (0) target = $region13
    $region12: #{tpu_custom_call.1} parent=1 // pred_region
      %34 = dma.done [#allocation4], 64
    $region13: #{tpu_custom_call.1} parent=1 // pred_fallthru
      _
    // Predicated region
    $region14: #{tpu_custom_call.1} parent=1 // pred_check
      _
    $region15: #{tpu_custom_call.1} parent=1 // pred_check_branch
      %36 = sbr.rel (0) target = $region17
    $region16: #{tpu_custom_call.1} parent=1 // pred_region
      %37 = dma.done [#allocation7], 128
    $region17: #{tpu_custom_call.1} parent=1 // pred_fallthru
      _
    %p39 = scmp.eq.s32.totalorder 0, 0
    // Predicated region
    $region18: #{tpu_custom_call.1} parent=1 // pred_check
      %p40 = pneg %p39
    $region19: #{tpu_custom_call.1} parent=1 // pred_check_branch
      %42 = sbr.rel (%p40) target = $region21
    $region20: #{tpu_custom_call.1} parent=1 // pred_region
      %43 = vst [vmem:[#allocation2] sm:$0xff] 0.0
    $region21: #{tpu_custom_call.1} parent=1 // pred_fallthru
      _
    %v44 = vld [vmem:[#allocation2] sm:$0xff]
    %v45 = vld [vmem:[#allocation3] sm:$0xf]
    %v46 = vld [vmem:[#allocation6] sm:$0xf]
    %v47 = vld [vmem:[#allocation6 + $0x4] sm:$0xf]
    %v50 = vunpack.c.l.b16 %v46
    %v51 = vunpack.c.l.b16 %v47
    %v52 = vpack.c.b16 %v51, %v50
    %vm54 = vcmask 130048
    %v56 = vsel %vm54, %v45, 0
    %58 = vmatprep.subr.bf16.mxu0 0
    %59 = vmatpush1.bf16.msra.mxu0 0
    %60 = vmatprep.subr.bf16.mxu0 0
    %61 = vmatpush1.bf16.msra.mxu0 0
    %62 = vmatprep.subr.bf16.mxu0 0
    %63 = vmatpush1.bf16.msra.mxu0 0
    %64 = vmatprep.subr.bf16.mxu0 0
    %65 = vmatpush1.bf16.msra.mxu0 0
    %66 = vmatprep.subr.bf16.mxu0 0
    %67 = vmatpush1.bf16.msra.mxu0 0
    %68 = vmatprep.subr.bf16.mxu0 0
    %69 = vmatpush1.bf16.msra.mxu0 0
    %70 = vmatprep.subr.bf16.mxu0 0
    %71 = vmatpush1.bf16.msra.mxu0 0
    %72 = vmatprep.subr.bf16.mxu0 0
    %73 = vmatpush1.bf16.msra.mxu0 %v52
    %74 = vmatprep.subr.bf16.mxu0 0
    %75 = vmatpush2.bf16.msra.mxu0 0
    %76 = vmatprep.subr.bf16.mxu0 0
    %77 = vmatpush2.bf16.msra.mxu0 0
    %78 = vmatprep.subr.bf16.mxu0 0
    %79 = vmatpush2.bf16.msra.mxu0 0
    %80 = vmatprep.subr.bf16.mxu0 0
    %81 = vmatpush2.bf16.msra.mxu0 0
    %82 = vmatprep.subr.bf16.mxu0 0
    %83 = vmatpush2.bf16.msra.mxu0 0
    %84 = vmatprep.subr.bf16.mxu0 0
    %85 = vmatpush2.bf16.msra.mxu0 0
    %86 = vmatprep.subr.bf16.mxu0 0
    %87 = vmatpush2.bf16.msra.mxu0 0
    %88 = vmatprep.subr.bf16.mxu0 0
    %89 = vmatpush2.bf16.msra.mxu0 0
    %90 = vmatprep.mubr.bf16.mxu0 0
    %91 = vmatmul.mubr.bf16.gmra.mxu0 %v56
    %v92 = vpop.f32.mrf.mxu0
    %v93 = vadd.f32 0.0, %v92
    %v94 = vpop.f32.mrf.mxu0
    %v95 = vpop.f32.mrf.mxu0
    %v96 = vpop.f32.mrf.mxu0
    %97 = vdwg.mxu0
    %v98 = vadd.f32 %v44, %v93
    %99 = vst [vmem:[#allocation2] sm:$0xff] %v98
    // Predicated region
    $region22: #{tpu_custom_call.1} parent=1 // pred_check
      %p100 = pneg %p39
    $region23: #{tpu_custom_call.1} parent=1 // pred_check_branch
      %102 = sbr.rel (%p100) target = $region25
    $region24: #{tpu_custom_call.1} parent=1 // pred_region
      %v103 = vld [vmem:[#allocation2] sm:$0xff]
      %v104 = vpack.c.bf16 %v103, %v103
      %105 = vst [vmem:[#allocation8] sm:$0xf] %v104
    $region25: #{tpu_custom_call.1} parent=1 // pred_fallthru
      _
    // Predicated region
    $region26: #{tpu_custom_call.1} parent=1 // pred_check
      _
    $region27: #{tpu_custom_call.1} parent=1 // pred_check_branch
      %107 = sbr.rel (0) target = $region29
    $region28: #{tpu_custom_call.1} parent=1 // pred_region
      %s109 = ssub.s32 64, 64
      %110 = vsyncadd [#allocation5], %s109
      %s112 = sshll.u32 [#allocation8], 4
      %s113 = int_to_ptr.vmem [resolvable:$true] %s112
      %115 = dma.vmem_to_hbm [thread:$0]  %s113, 64, %s2, [#allocation5]
    $region29: #{tpu_custom_call.1} parent=1 // pred_fallthru
      _
    // Predicated region
    $region30: #{tpu_custom_call.1} parent=1 // pred_check
      _
    $region31: #{tpu_custom_call.1} parent=1 // pred_check_branch
      %117 = sbr.rel (0) target = $region33
    $region32: #{tpu_custom_call.1} parent=1 // pred_region
      %118 = dma.done [#allocation5], 64
    $region33: #{tpu_custom_call.1} parent=1 // pred_fallthru
      _
    %119 = vsyncpa [#allocation4], 1
    %120 = vsyncpa [#allocation7], 1
    %121 = vsyncpa [#allocation5], 1

</llo_original>
